<compile_context>
chip_gen: v7x
topology: tpu7x:2x2x1
jax: 0.10.0
libtpu: 0.0.40
codegen_flags: <defaults>
</compile_context>

<pallas_src>
import functools

import jax
import jax.numpy as jnp
from jax.experimental import pallas as pl
from jax.experimental.pallas import tpu as pltpu


def _round_up(x, m):
    return (x + m - 1) // m * m


def _cdiv(a, b):
    return (a + b - 1) // b


def _fused_mlp_kernel(x_ref, w1_ref, w2_ref, w3_ref, out_ref, *,
                      sigmoid_coeff, use_sigmoid):
    """Full forward pass for one batch tile.

    x_ref  : (bt, Tp*S)   bf16  time-padded, time-major flattened input rows
    w1_ref : (Tp*S, T*H)  bf16  block-banded Conv2d(1,H,(S,K)) weight
    w2_ref : (T*H, H)     bf16  Conv2d(H,H,(1,T)) weight stacked over (t, h_in)
    w3_ref : (H, F)       bf16  Linear(H,F,bias=False).weight.T
    out_ref: (bt, F)      f32
    """
    # conv1 ('same' time padding) as one banded matmul; ReLU on the f32 accumulator.
    y1 = jnp.dot(x_ref[...], w1_ref[...], preferred_element_type=jnp.float32)
    y1 = jnp.maximum(y1, 0.0)                                   # (bt, T*H) f32
    # conv2 (kernel spanning all T timesteps) as one stacked matmul.
    acc = jnp.dot(y1.astype(jnp.bfloat16), w2_ref[...],
                  preferred_element_type=jnp.float32)           # (bt, H) f32
    h = jnp.maximum(acc, 0.0)
    # bias-free linear head.
    scores = jnp.dot(h.astype(jnp.bfloat16), w3_ref[...],
                     preferred_element_type=jnp.float32)        # (bt, F) f32
    if use_sigmoid:
        scores = jax.nn.sigmoid(sigmoid_coeff * scores)         # elementwise stays f32
    out_ref[...] = scores


class MLPClassifierForSingleObjectivePallas:
    # Per-tile working-set budget: conservative for v7x (64 MiB physical VMEM,
    # 32 MiB default scoped); v5e/v6e have more headroom.
    _VMEM_BUDGET = 24 * 1024 * 1024
    _MAX_BLOCK_ROWS = 4096

    def __init__(self, num_series, num_in_timesteps, num_factor_scores,
                 hidden_sizes, use_sigmoid_restriction,
                 sigmoid_eccentricity_coeff=10.0, key=None):
        assert len(hidden_sizes) == 1
        self.num_series = num_series
        self.num_in_timesteps = num_in_timesteps
        self.num_factor_scores = num_factor_scores
        self.hidden = hidden_sizes[0]
        self.use_sigmoid_restriction = use_sigmoid_restriction
        self.sigmoid_eccentricity_coeff = (
            sigmoid_eccentricity_coeff if use_sigmoid_restriction else None)

        # Temporal kernel width is always odd; 'same' padding along time.
        self.tkw = num_in_timesteps - (num_in_timesteps - 1) % 2
        self.pad = self.tkw // 2

        H, S, T, K, F = (self.hidden, num_series, num_in_timesteps,
                         self.tkw, num_factor_scores)
        Tp = T + 2 * self.pad           # = T + K - 1
        self.Tp = Tp

        if key is None:
            key = jax.random.PRNGKey(0)
        k1, k2, k3 = jax.random.split(key, 3)
        # Deterministic synthetic init (kaiming-uniform-ish, bias-free like the module).
        self.w1 = (jax.random.uniform(k1, (H, 1, S, K), jnp.float32, -1.0, 1.0)
                   / jnp.sqrt(float(S * K)))              # Conv2d(1, H, (S, K))
        self.w2 = (jax.random.uniform(k2, (H, H, 1, T), jnp.float32, -1.0, 1.0)
                   / jnp.sqrt(float(H * T)))              # Conv2d(H, H, (1, T))
        self.w3 = (jax.random.uniform(k3, (F, H), jnp.float32, -1.0, 1.0)
                   / jnp.sqrt(float(H)))                  # Linear(H, F, bias=False)

        # ---- matmul-ready weights (built once, VMEM-resident across the batch grid) ----
        # w1f[k*S + s, h] = w1[h, 0, s, k]  (matches time-major / series-minor lane layout)
        w1f = jnp.transpose(self.w1[:, 0], (2, 1, 0)).reshape(K * S, H)
        # Block-banded conv1 weight: output timestep t reads input rows [t*S, (t+K)*S).
        # The ~2x zero-band FLOPs are far cheaper than T tiny misaligned matmuls.
        w1_big = jnp.zeros((Tp * S, T * H), jnp.float32)
        for t in range(T):
            w1_big = w1_big.at[t * S:(t + K) * S, t * H:(t + 1) * H].set(w1f)
        # conv2 weight stacked over (t, h_in): row = t*H + h_in, col = h_out.
        w2_stack = jnp.transpose(self.w2[:, :, 0, :], (2, 1, 0)).reshape(T * H, H)

        # bf16 MXU operands; accumulation stays f32 inside the kernel.
        self.w1_big = w1_big.astype(jnp.bfloat16)
        self.w2_stack = w2_stack.astype(jnp.bfloat16)
        self.w3f = self.w3.T.astype(jnp.bfloat16)

        # ---- VMEM-budgeted batch-tile size ----
        # TODO(synk): for very large Tp*S*T*H the banded W1_big itself may exceed VMEM;
        # such configs would need a K-tiled grid instead of a fully resident weight.
        TpS, TH = Tp * S, T * H
        weight_bytes = 2 * 2 * (TpS * TH + TH * H + H * F)       # bf16, x2 buffering slack
        per_row_bytes = (2 * 2 * TpS            # double-buffered bf16 input tile
                         + 4 * TH + 2 * TH      # f32 Y1 + its bf16 copy
                         + 4 * H + 2 * H        # f32 acc + bf16 copy
                         + 2 * 4 * F)           # double-buffered f32 output tile
        avail = max(self._VMEM_BUDGET - weight_bytes, 2 * 1024 * 1024)
        self.block_rows = int(max(8, min(self._MAX_BLOCK_ROWS,
                                         (avail // per_row_bytes) // 8 * 8)))
        self._weight_bytes = weight_bytes
        self._per_row_bytes = per_row_bytes

    def __call__(self, X, use_final_activation=True):
        # use_final_activation is accepted but ignored, exactly like the PyTorch module.
        B, T, S = X.shape
        assert T == self.num_in_timesteps and S == self.num_series
        H, F, Tp = self.hidden, self.num_factor_scores, self.Tp
        coeff = (1.0 if self.sigmoid_eccentricity_coeff is None
                 else float(self.sigmoid_eccentricity_coeff))

        # ---- glue (cheap; no K-fold im2col): 'same' time padding + flatten + bf16 ----
        Xp = jnp.pad(X.astype(jnp.float32), ((0, 0), (self.pad, self.pad), (0, 0)))
        X2 = Xp.reshape(B, Tp * S).astype(jnp.bfloat16)

        # ---- batch tiling: balanced tiles (minimal zero-row padding); >=2 grid steps
        # when possible so v7x's second TensorCore gets work (harmless on v5e/v6e).
        n_tiles = max(1, _cdiv(B, self.block_rows))
        if n_tiles == 1 and B > 8:
            n_tiles = 2
        bt = _round_up(_cdiv(B, n_tiles), 8)
        bp = n_tiles * bt
        if bp != B:
            X2 = jnp.pad(X2, ((0, bp - B), (0, 0)))

        vmem_need = self._weight_bytes + bt * self._per_row_bytes
        vmem_limit = int(min(64 * 1024 * 1024,
                             max(2 * vmem_need, 16 * 1024 * 1024)))

        kernel = functools.partial(
            _fused_mlp_kernel, sigmoid_coeff=coeff,
            use_sigmoid=self.use_sigmoid_restriction)

        out = pl.pallas_call(
            kernel,
            out_shape=jax.ShapeDtypeStruct((bp, F), jnp.float32),
            grid=(n_tiles,),
            in_specs=[
                pl.BlockSpec((bt, Tp * S), lambda i: (i, 0)),      # batch tile
                pl.BlockSpec((Tp * S, T * H), lambda i: (0, 0)),   # resident weights
                pl.BlockSpec((T * H, H), lambda i: (0, 0)),
                pl.BlockSpec((H, F), lambda i: (0, 0)),
            ],
            out_specs=pl.BlockSpec((bt, F), lambda i: (i, 0)),
            compiler_params=pltpu.CompilerParams(
                dimension_semantics=("parallel",),   # megacore sharding on v7x
                vmem_limit_bytes=vmem_limit),
        )(X2, self.w1_big, self.w2_stack, self.w3f)

        return out[:B], None


def _reference_forward(model, X):
    """Pure-JAX f32 reference mirroring the PyTorch forward."""
    B, T, S = X.shape
    K = model.tkw
    Xt = jnp.transpose(X, (0, 2, 1))                              # (B, S, T)
    Xpad = jnp.pad(Xt, ((0, 0), (0, 0), (model.pad, model.pad)))
    cols = jnp.stack([Xpad[:, :, t:t + K] for t in range(T)], axis=1)  # (B, T, S, K)
    y1 = jnp.maximum(jnp.einsum('btsk,hsk->bth', cols, model.w1[:, 0]), 0.0)
    y2 = jnp.maximum(jnp.einsum('bth,oht->bo', y1, model.w2[:, :, 0, :]), 0.0)
    out = jnp.einsum('bh,fh->bf', y2, model.w3)
    if model.use_sigmoid_restriction:
        out = jax.nn.sigmoid(model.sigmoid_eccentricity_coeff * out)
    return out


if __name__ == "__main__":
    B, S, T, H, F = 2, 4, 16, 32, 8   # batch, num_series, num_in_timesteps, hidden, factors
    key = jax.random.PRNGKey(0)
    kx, kp = jax.random.split(key)

    model = MLPClassifierForSingleObjectivePallas(
        num_series=S, num_in_timesteps=T, num_factor_scores=F,
        hidden_sizes=[H], use_sigmoid_restriction=True,
        sigmoid_eccentricity_coeff=10.0, key=kp)

    X = jax.random.normal(kx, (B, T, S), dtype=jnp.float32)

    out, aux = model(X)
    out = jax.block_until_ready(out)
    assert aux is None
    assert out.shape == (B, F)

    ref = _reference_forward(model, X)
    # bf16 MXU operands (f32 accumulation) -> loosened tolerance vs the f32 reference.
    assert jnp.allclose(out, ref, atol=2e-2, rtol=2e-2), "mismatch vs JAX reference"

    print("KERNEL_OK")
</pallas_src>

<mosaic_0001>
module attributes {stable_mosaic.version = 11 : i64} {
  func.func @_fused_mlp_kernel(%arg0: i32, %arg1: memref<8x120xbf16, #tpu.memory_space<vmem>>, %arg2: memref<120x512xbf16, #tpu.memory_space<vmem>>, %arg3: memref<512x32xbf16, #tpu.memory_space<vmem>>, %arg4: memref<32x8xbf16, #tpu.memory_space<vmem>>, %arg5: memref<8x8xf32, #tpu.memory_space<vmem>>) attributes {dimension_semantics = [#tpu.dimension_semantics<parallel>], iteration_bounds = array<i64: 1>, scalar_prefetch = 0 : i64, scratch_operands = 0 : i64, tpu.core_type = #tpu.core_type<tc>, window_params = [{transform_indices = @transform_0, window_bounds = array<i64: 8, 120>}, {pipeline_mode = #tpu.pipeline_mode<synchronous>, transform_indices = @transform_1, window_bounds = array<i64: 120, 512>}, {pipeline_mode = #tpu.pipeline_mode<synchronous>, transform_indices = @transform_2, window_bounds = array<i64: 512, 32>}, {pipeline_mode = #tpu.pipeline_mode<synchronous>, transform_indices = @transform_3, window_bounds = array<i64: 32, 8>}, {transform_indices = @transform_4, window_bounds = array<i64: 8, 8>}]} {
    %c0 = arith.constant 0 : index
    %c0_0 = arith.constant 0 : index
    %0 = vector.load %arg1[%c0, %c0_0] : memref<8x120xbf16, #tpu.memory_space<vmem>>, vector<8x120xbf16>
    %c0_1 = arith.constant 0 : index
    %c0_2 = arith.constant 0 : index
    %1 = vector.load %arg2[%c0_1, %c0_2] : memref<120x512xbf16, #tpu.memory_space<vmem>>, vector<120x512xbf16>
    %cst = arith.constant dense<0.000000e+00> : vector<8x512xf32>
    %2 = tpu.matmul %0, %1, %cst {dimension_numbers = #tpu.dot_dimension_numbers<[1], [0], [0], [1], [0, 0, 1, 1], [], []>} : vector<8x120xbf16>, vector<120x512xbf16>, vector<8x512xf32> -> vector<8x512xf32>
    %cst_3 = arith.constant 0.000000e+00 : f32
    %3 = vector.broadcast %cst_3 : f32 to vector<8x512xf32>
    %4 = arith.maximumf %2, %3 : vector<8x512xf32>
    %5 = arith.truncf %4 : vector<8x512xf32> to vector<8x512xbf16>
    %c0_4 = arith.constant 0 : index
    %c0_5 = arith.constant 0 : index
    %6 = vector.load %arg3[%c0_4, %c0_5] : memref<512x32xbf16, #tpu.memory_space<vmem>>, vector<512x32xbf16>
    %cst_6 = arith.constant dense<0.000000e+00> : vector<8x32xf32>
    %7 = tpu.matmul %5, %6, %cst_6 {dimension_numbers = #tpu.dot_dimension_numbers<[1], [0], [0], [1], [0, 0, 1, 1], [], []>} : vector<8x512xbf16>, vector<512x32xbf16>, vector<8x32xf32> -> vector<8x32xf32>
    %cst_7 = arith.constant 0.000000e+00 : f32
    %8 = vector.broadcast %cst_7 : f32 to vector<8x32xf32>
    %9 = arith.maximumf %7, %8 : vector<8x32xf32>
    %10 = arith.truncf %9 : vector<8x32xf32> to vector<8x32xbf16>
    %c0_8 = arith.constant 0 : index
    %c0_9 = arith.constant 0 : index
    %11 = vector.load %arg4[%c0_8, %c0_9] : memref<32x8xbf16, #tpu.memory_space<vmem>>, vector<32x8xbf16>
    %cst_10 = arith.constant dense<0.000000e+00> : vector<8x8xf32>
    %12 = tpu.matmul %10, %11, %cst_10 {dimension_numbers = #tpu.dot_dimension_numbers<[1], [0], [0], [1], [0, 0, 1, 1], [], []>} : vector<8x32xbf16>, vector<32x8xbf16>, vector<8x8xf32> -> vector<8x8xf32>
    %cst_11 = arith.constant 1.000000e+01 : f32
    %13 = vector.broadcast %cst_11 : f32 to vector<8x8xf32>
    %14 = arith.mulf %13, %12 : vector<8x8xf32>
    %15 = arith.negf %14 : vector<8x8xf32>
    %16 = math.exp %15 : vector<8x8xf32>
    %cst_12 = arith.constant 1.000000e+00 : f32
    %17 = vector.broadcast %cst_12 : f32 to vector<8x8xf32>
    %18 = arith.addf %17, %16 : vector<8x8xf32>
    %19 = arith.divf %17, %18 : vector<8x8xf32>
    %c0_13 = arith.constant 0 : index
    %c0_14 = arith.constant 0 : index
    %20 = vector.load %arg5[%c0_13, %c0_14] : memref<8x8xf32, #tpu.memory_space<vmem>>, vector<8x8xf32>
    tpu.vector_store %arg5[%c0_13, %c0_14], %19 {strides = array<i32>} : memref<8x8xf32, #tpu.memory_space<vmem>>, vector<8x8xf32>,
    return
  }
  func.func @transform_0(%arg0: i32) -> (i32, i32) {
    %c0_i32 = arith.constant 0 : i32
    %c0_i32_0 = arith.constant 0 : i32
    return %arg0, %c0_i32 : i32, i32
  }
  func.func @transform_1(%arg0: i32) -> (i32, i32) {
    %c0_i32 = arith.constant 0 : i32
    %c0_i32_0 = arith.constant 0 : i32
    %c0_i32_1 = arith.constant 0 : i32
    return %c0_i32, %c0_i32_0 : i32, i32
  }
  func.func @transform_2(%arg0: i32) -> (i32, i32) {
    %c0_i32 = arith.constant 0 : i32
    %c0_i32_0 = arith.constant 0 : i32
    %c0_i32_1 = arith.constant 0 : i32
    return %c0_i32, %c0_i32_0 : i32, i32
  }
  func.func @transform_3(%arg0: i32) -> (i32, i32) {
    %c0_i32 = arith.constant 0 : i32
    %c0_i32_0 = arith.constant 0 : i32
    %c0_i32_1 = arith.constant 0 : i32
    return %c0_i32, %c0_i32_0 : i32, i32
  }
  func.func @transform_4(%arg0: i32) -> (i32, i32) {
    %c0_i32 = arith.constant 0 : i32
    %c0_i32_0 = arith.constant 0 : i32
    return %arg0, %c0_i32 : i32, i32
  }
}

</mosaic_0001>

<llo_original>
// kernel: tpu_custom_call.1
$region0: #{tpu_custom_call.1}
  #allocation0 [shape = 'u32[]', space=smem, size = 0x4, offset = 0x4, fixed_abs, tag = 'smem constant byte address 0x4 - core index']
  #allocation1 [shape = 'u32[144,128]{1,0:T(1,128)}', space=vmem, size = 0x12000, scoped, tag = 'internal scratch']
  %s0 = inlined_call_operand.vmem [shape: bf16[8,120], index: 0, kind: input, shape index: {}]
  %s1 = inlined_call_operand.vmem [shape: bf16[120,512], index: 1, kind: input, shape index: {}]
  %s2 = inlined_call_operand.vmem [shape: bf16[512,32], index: 2, kind: input, shape index: {}]
  %s3 = inlined_call_operand.vmem [shape: bf16[32,8], index: 3, kind: input, shape index: {}]
  %s4 = inlined_call_operand.hbm [shape: f32[8,8], index: 4, kind: output, shape index: {}]
  %s5 = sld [smem:[#allocation0]]
  $region26: #{tpu_custom_call.1} parent=0
    _
  %s7 = ssub.s32 1, %s5
  %s8 = scalar_select 0, %s7, %s5
  $region1: #{tpu_custom_call.1} parent=0
    #allocation2 [shape = 'u8[4096]{0}', space=vmem, size = 0x1000, scoped, tag = 'output window, operand 0, single buffered']
    #allocation3 [shape = 's32[1]{0}', space=sflag, size = 0x4, scoped, tag = 'scoped memory for tpu_custom_call.1']
    %9 = vsyncpa [#allocation3], 0
    // Predicated region
    $region2: #{tpu_custom_call.1} parent=1 // pred_check
      _
    $region3: #{tpu_custom_call.1} parent=1 // pred_check_branch
      %11 = sbr.rel (0) target = $region5
    $region4: #{tpu_custom_call.1} parent=1 // pred_region
      _
    $region5: #{tpu_custom_call.1} parent=1 // pred_fallthru
      _
    // Predicated region
    $region6: #{tpu_custom_call.1} parent=1 // pred_check
      _
    $region7: #{tpu_custom_call.1} parent=1 // pred_check_branch
      %13 = sbr.rel (0) target = $region9
    $region8: #{tpu_custom_call.1} parent=1 // pred_region
      _
    $region9: #{tpu_custom_call.1} parent=1 // pred_fallthru
      _
    // Predicated region
    $region10: #{tpu_custom_call.1} parent=1 // pred_check
      _
    $region11: #{tpu_custom_call.1} parent=1 // pred_check_branch
      %15 = sbr.rel (0) target = $region13
    $region12: #{tpu_custom_call.1} parent=1 // pred_region
      _
    $region13: #{tpu_custom_call.1} parent=1 // pred_fallthru
      _
    // Predicated region
    $region14: #{tpu_custom_call.1} parent=1 // pred_check
      _
    $region15: #{tpu_custom_call.1} parent=1 // pred_check_branch
      %17 = sbr.rel (0) target = $region17
    $region16: #{tpu_custom_call.1} parent=1 // pred_region
      _
    $region17: #{tpu_custom_call.1} parent=1 // pred_fallthru
      _
    %v19 = vld [vmem:[%s0] sm:$0xf]
    %v20 = vld [vmem:[%s1] sm:$0xff]
    %v21 = vld [vmem:[%s1 + $0x8] sm:$0xff]
    %v22 = vld [vmem:[%s1 + $0x10] sm:$0xff]
    %v23 = vld [vmem:[%s1 + $0x18] sm:$0xff]
    %v24 = vld [vmem:[%s1 + $0x20] sm:$0xff]
    %v25 = vld [vmem:[%s1 + $0x28] sm:$0xff]
    %v26 = vld [vmem:[%s1 + $0x30] sm:$0xff]
    %v27 = vld [vmem:[%s1 + $0x38] sm:$0xff]
    %v28 = vld [vmem:[%s1 + $0x40] sm:$0xff]
    %v29 = vld [vmem:[%s1 + $0x48] sm:$0xff]
    %v30 = vld [vmem:[%s1 + $0x50] sm:$0xff]
    %v31 = vld [vmem:[%s1 + $0x58] sm:$0xff]
    %v32 = vld [vmem:[%s1 + $0x60] sm:$0xff]
    %v33 = vld [vmem:[%s1 + $0x68] sm:$0xff]
    %v34 = vld [vmem:[%s1 + $0x70] sm:$0xff]
    %v35 = vld [vmem:[%s1 + $0x78] sm:$0xff]
    %v36 = vld [vmem:[%s1 + $0x80] sm:$0xff]
    %v37 = vld [vmem:[%s1 + $0x88] sm:$0xff]
    %v38 = vld [vmem:[%s1 + $0x90] sm:$0xff]
    %v39 = vld [vmem:[%s1 + $0x98] sm:$0xff]
    %v40 = vld [vmem:[%s1 + $0xa0] sm:$0xff]
    %v41 = vld [vmem:[%s1 + $0xa8] sm:$0xff]
    %v42 = vld [vmem:[%s1 + $0xb0] sm:$0xff]
    %v43 = vld [vmem:[%s1 + $0xb8] sm:$0xff]
    %v44 = vld [vmem:[%s1 + $0xc0] sm:$0xff]
    %v45 = vld [vmem:[%s1 + $0xc8] sm:$0xff]
    %v46 = vld [vmem:[%s1 + $0xd0] sm:$0xff]
    %v47 = vld [vmem:[%s1 + $0xd8] sm:$0xff]
    %v48 = vld [vmem:[%s1 + $0xe0] sm:$0xff]
    %v49 = vld [vmem:[%s1 + $0xe8] sm:$0xff]
    %v80 = vunpack.c.l.b16 %v20
    %v81 = vunpack.c.h.b16 %v20
    %v82 = vunpack.c.l.b16 %v21
    %v83 = vunpack.c.h.b16 %v21
    %v84 = vunpack.c.l.b16 %v22
    %v85 = vunpack.c.h.b16 %v22
    %v86 = vunpack.c.l.b16 %v23
    %v87 = vunpack.c.h.b16 %v23
    %v88 = vunpack.c.l.b16 %v24
    %v89 = vunpack.c.h.b16 %v24
    %v90 = vunpack.c.l.b16 %v25
    %v91 = vunpack.c.h.b16 %v25
    %v92 = vunpack.c.l.b16 %v26
    %v93 = vunpack.c.h.b16 %v26
    %v94 = vunpack.c.l.b16 %v27
    %v95 = vunpack.c.h.b16 %v27
    %v96 = vunpack.c.l.b16 %v28
    %v97 = vunpack.c.h.b16 %v28
    %v98 = vunpack.c.l.b16 %v29
    %v99 = vunpack.c.h.b16 %v29
    %v100 = vunpack.c.l.b16 %v30
    %v101 = vunpack.c.h.b16 %v30
    %v102 = vunpack.c.l.b16 %v31
    %v103 = vunpack.c.h.b16 %v31
    %v104 = vunpack.c.l.b16 %v32
    %v105 = vunpack.c.h.b16 %v32
    %v106 = vunpack.c.l.b16 %v33
    %v107 = vunpack.c.h.b16 %v33
    %v108 = vunpack.c.l.b16 %v34
    %v109 = vunpack.c.h.b16 %v34
    %v110 = vunpack.c.l.b16 %v35
    %v111 = vunpack.c.h.b16 %v35
    %v112 = vunpack.c.l.b16 %v36
    %v113 = vunpack.c.h.b16 %v36
    %v114 = vunpack.c.l.b16 %v37
    %v115 = vunpack.c.h.b16 %v37
    %v116 = vunpack.c.l.b16 %v38
    %v117 = vunpack.c.h.b16 %v38
    %v118 = vunpack.c.l.b16 %v39
    %v119 = vunpack.c.h.b16 %v39
    %v120 = vunpack.c.l.b16 %v40
    %v121 = vunpack.c.h.b16 %v40
    %v122 = vunpack.c.l.b16 %v41
    %v123 = vunpack.c.h.b16 %v41
    %v124 = vunpack.c.l.b16 %v42
    %v125 = vunpack.c.h.b16 %v42
    %v126 = vunpack.c.l.b16 %v43
    %v127 = vunpack.c.h.b16 %v43
    %v128 = vunpack.c.l.b16 %v44
    %v129 = vunpack.c.h.b16 %v44
    %v130 = vunpack.c.l.b16 %v45
    %v131 = vunpack.c.h.b16 %v45
    %v132 = vunpack.c.l.b16 %v46
    %v133 = vunpack.c.h.b16 %v46
    %v134 = vunpack.c.l.b16 %v47
    %v135 = vunpack.c.h.b16 %v47
    %v136 = vunpack.c.l.b16 %v48
    %v137 = vunpack.c.h.b16 %v48
    %v138 = vunpack.c.l.b16 %v49
    %v139 = vunpack.c.h.b16 %v49
    %v140 = vpack.c.b16 %v84, %v80
    %v141 = vpack.c.b16 %v85, %v81
    %v142 = vpack.c.b16 %v86, %v82
    %v143 = vpack.c.b16 %v87, %v83
    %v144 = vpack.c.b16 %v92, %v88
    %v145 = vpack.c.b16 %v93, %v89
    %v146 = vpack.c.b16 %v94, %v90
    %v147 = vpack.c.b16 %v95, %v91
    %v148 = vpack.c.b16 %v100, %v96
    %v149 = vpack.c.b16 %v101, %v97
    %v150 = vpack.c.b16 %v102, %v98
    %v151 = vpack.c.b16 %v103, %v99
    %v152 = vpack.c.b16 %v108, %v104
    %v153 = vpack.c.b16 %v109, %v105
    %v154 = vpack.c.b16 %v110, %v106
    %v155 = vpack.c.b16 %v111, %v107
    %v156 = vpack.c.b16 %v116, %v112
    %v157 = vpack.c.b16 %v117, %v113
    %v158 = vpack.c.b16 %v118, %v114
    %v159 = vpack.c.b16 %v119, %v115
    %v160 = vpack.c.b16 %v124, %v120
    %v161 = vpack.c.b16 %v125, %v121
    %v162 = vpack.c.b16 %v126, %v122
    %v163 = vpack.c.b16 %v127, %v123
    %v164 = vpack.c.b16 %v132, %v128
    %v165 = vpack.c.b16 %v133, %v129
    %v166 = vpack.c.b16 %v134, %v130
    %v167 = vpack.c.b16 %v135, %v131
    %v168 = vpack.c.b16 %v136, %v136
    %v169 = vpack.c.b16 %v137, %v137
    %v170 = vpack.c.b16 %v138, %v138
    %v171 = vpack.c.b16 %v139, %v139
    %vm200 = vcmask 982016
    %v202 = vsel %vm200, %v19, 0
    %vm204 = vcmask 1043456
    %v206 = vsel %vm204, %v168, 0
    %v209 = vsel %vm204, %v169, 0
    %v212 = vsel %vm204, %v170, 0
    %v215 = vsel %vm204, %v171, 0
    %217 = vmatprep.subr.bf16.mxu0 %v141
    %218 = vmatpush1.bf16.msra.mxu0 %v140
    %219 = vmatprep.subr.bf16.mxu0 %v145
    %220 = vmatpush1.bf16.msra.mxu0 %v144
    %221 = vmatprep.subr.bf16.mxu0 %v149
    %222 = vmatpush1.bf16.msra.mxu0 %v148
    %223 = vmatprep.subr.bf16.mxu0 %v153
    %224 = vmatpush1.bf16.msra.mxu0 %v152
    %225 = vmatprep.subr.bf16.mxu0 %v157
    %226 = vmatpush1.bf16.msra.mxu0 %v156
    %227 = vmatprep.subr.bf16.mxu0 %v161
    %228 = vmatpush1.bf16.msra.mxu0 %v160
    %229 = vmatprep.subr.bf16.mxu0 %v165
    %230 = vmatpush1.bf16.msra.mxu0 %v164
    %231 = vmatprep.subr.bf16.mxu0 %v209
    %232 = vmatpush1.bf16.msra.mxu0 %v206
    %233 = vmatprep.subr.bf16.mxu0 0
    %234 = vmatpush1.bf16.msra.mxu0 0
    %235 = vmatprep.subr.bf16.mxu0 0
    %236 = vmatpush1.bf16.msra.mxu0 0
    %237 = vmatprep.subr.bf16.mxu0 0
    %238 = vmatpush1.bf16.msra.mxu0 0
    %239 = vmatprep.subr.bf16.mxu0 0
    %240 = vmatpush1.bf16.msra.mxu0 0
    %241 = vmatprep.subr.bf16.mxu0 0
    %242 = vmatpush1.bf16.msra.mxu0 0
    %243 = vmatprep.subr.bf16.mxu0 0
    %244 = vmatpush1.bf16.msra.mxu0 0
    %245 = vmatprep.subr.bf16.mxu0 0
    %246 = vmatpush1.bf16.msra.mxu0 0
    %247 = vmatprep.subr.bf16.mxu0 0
    %248 = vmatpush1.bf16.msra.mxu0 0
    %249 = vmatprep.mubr.bf16.mxu0 0
    %250 = vmatmul.mubr.bf16.gmra.mrb[0].mxu0 %v202
    %v251 = vpop.f32.mrb[0].mxu0
    %v252 = vadd.f32 0.0, %v251
    %v253 = vpop.f32.mrb[0].mxu0
    %v254 = vadd.f32 0.0, %v253
    %v255 = vpop.f32.mrb[0].mxu0
    %v256 = vpop.f32.mrb[0].mxu0
    %257 = vdwg.mxu0
    %258 = vmatprep.subr.bf16.mxu0 %v143
    %259 = vmatpush1.bf16.msra.mxu0 %v142
    %260 = vmatprep.subr.bf16.mxu0 %v147
    %261 = vmatpush1.bf16.msra.mxu0 %v146
    %262 = vmatprep.subr.bf16.mxu0 %v151
    %263 = vmatpush1.bf16.msra.mxu0 %v150
    %264 = vmatprep.subr.bf16.mxu0 %v155
    %265 = vmatpush1.bf16.msra.mxu0 %v154
    %266 = vmatprep.subr.bf16.mxu0 %v159
    %267 = vmatpush1.bf16.msra.mxu0 %v158
    %268 = vmatprep.subr.bf16.mxu0 %v163
    %269 = vmatpush1.bf16.msra.mxu0 %v162
    %270 = vmatprep.subr.bf16.mxu0 %v167
    %271 = vmatpush1.bf16.msra.mxu0 %v166
    %272 = vmatprep.subr.bf16.mxu0 %v215
    %273 = vmatpush1.bf16.msra.mxu0 %v212
    %274 = vmatprep.subr.bf16.mxu0 0
    %275 = vmatpush1.bf16.msra.mxu0 0
    %276 = vmatprep.subr.bf16.mxu0 0
    %277 = vmatpush1.bf16.msra.mxu0 0
    %278 = vmatprep.subr.bf16.mxu0 0
    %279 = vmatpush1.bf16.msra.mxu0 0
    %280 = vmatprep.subr.bf16.mxu0 0
    %281 = vmatpush1.bf16.msra.mxu0 0
    %282 = vmatprep.subr.bf16.mxu0 0
    %283 = vmatpush1.bf16.msra.mxu0 0
    %284 = vmatprep.subr.bf16.mxu0 0
    %285 = vmatpush1.bf16.msra.mxu0 0
    %286 = vmatprep.subr.bf16.mxu0 0
    %287 = vmatpush1.bf16.msra.mxu0 0
    %288 = vmatprep.subr.bf16.mxu0 0
    %289 = vmatpush1.bf16.msra.mxu0 0
    %290 = vmatprep.mubr.bf16.mxu0 0
    %291 = vmatmul.mubr.bf16.gmra.mrb[0].mxu0 %v202
    %v292 = vpop.f32.mrb[0].mxu0
    %v293 = vadd.f32 0.0, %v292
    %v294 = vpop.f32.mrb[0].mxu0
    %v295 = vadd.f32 0.0, %v294
    %v296 = vpop.f32.mrb[0].mxu0
    %v297 = vpop.f32.mrb[0].mxu0
    %298 = vdwg.mxu0
    %v299 = vmax.f32 %v252, 0.0
    %v300 = vmax.f32 %v254, 0.0
    %v301 = vmax.f32 %v293, 0.0
    %v302 = vmax.f32 %v295, 0.0
    %v303 = vpack.c.bf16 %v299, %v299
    %v304 = vpack.c.bf16 %v300, %v300
    %v305 = vpack.c.bf16 %v301, %v301
    %v306 = vpack.c.bf16 %v302, %v302
    %v307 = vld [vmem:[%s2] sm:$0xf]
    %v308 = vld [vmem:[%s2 + $0x4] sm:$0xf]
    %v309 = vld [vmem:[%s2 + $0x8] sm:$0xf]
    %v310 = vld [vmem:[%s2 + $0xc] sm:$0xf]
    %v311 = vld [vmem:[%s2 + $0x10] sm:$0xf]
    %v312 = vld [vmem:[%s2 + $0x14] sm:$0xf]
    %v313 = vld [vmem:[%s2 + $0x18] sm:$0xf]
    %v314 = vld [vmem:[%s2 + $0x1c] sm:$0xf]
    %v315 = vld [vmem:[%s2 + $0x20] sm:$0xf]
    %v316 = vld [vmem:[%s2 + $0x24] sm:$0xf]
    %v317 = vld [vmem:[%s2 + $0x28] sm:$0xf]
    %v318 = vld [vmem:[%s2 + $0x2c] sm:$0xf]
    %v319 = vld [vmem:[%s2 + $0x30] sm:$0xf]
    %v320 = vld [vmem:[%s2 + $0x34] sm:$0xf]
    %v321 = vld [vmem:[%s2 + $0x38] sm:$0xf]
    %v322 = vld [vmem:[%s2 + $0x3c] sm:$0xf]
    %v323 = vld [vmem:[%s2 + $0x40] sm:$0xf]
    %v324 = vld [vmem:[%s2 + $0x44] sm:$0xf]
    %v325 = vld [vmem:[%s2 + $0x48] sm:$0xf]
    %v326 = vld [vmem:[%s2 + $0x4c] sm:$0xf]
    %v327 = vld [vmem:[%s2 + $0x50] sm:$0xf]
    %v328 = vld [vmem:[%s2 + $0x54] sm:$0xf]
    %v329 = vld [vmem:[%s2 + $0x58] sm:$0xf]
    %v330 = vld [vmem:[%s2 + $0x5c] sm:$0xf]
    %v331 = vld [vmem:[%s2 + $0x60] sm:$0xf]
    %v332 = vld [vmem:[%s2 + $0x64] sm:$0xf]
    %v333 = vld [vmem:[%s2 + $0x68] sm:$0xf]
    %v334 = vld [vmem:[%s2 + $0x6c] sm:$0xf]
    %v335 = vld [vmem:[%s2 + $0x70] sm:$0xf]
    %v336 = vld [vmem:[%s2 + $0x74] sm:$0xf]
    %v337 = vld [vmem:[%s2 + $0x78] sm:$0xf]
    %v338 = vld [vmem:[%s2 + $0x7c] sm:$0xf]
    %v339 = vld [vmem:[%s2 + $0x80] sm:$0xf]
    %v340 = vld [vmem:[%s2 + $0x84] sm:$0xf]
    %v341 = vld [vmem:[%s2 + $0x88] sm:$0xf]
    %v342 = vld [vmem:[%s2 + $0x8c] sm:$0xf]
    %v343 = vld [vmem:[%s2 + $0x90] sm:$0xf]
    %v344 = vld [vmem:[%s2 + $0x94] sm:$0xf]
    %v345 = vld [vmem:[%s2 + $0x98] sm:$0xf]
    %v346 = vld [vmem:[%s2 + $0x9c] sm:$0xf]
    %v347 = vld [vmem:[%s2 + $0xa0] sm:$0xf]
    %v348 = vld [vmem:[%s2 + $0xa4] sm:$0xf]
    %v349 = vld [vmem:[%s2 + $0xa8] sm:$0xf]
    %v350 = vld [vmem:[%s2 + $0xac] sm:$0xf]
    %v351 = vld [vmem:[%s2 + $0xb0] sm:$0xf]
    %v352 = vld [vmem:[%s2 + $0xb4] sm:$0xf]
    %v353 = vld [vmem:[%s2 + $0xb8] sm:$0xf]
    %v354 = vld [vmem:[%s2 + $0xbc] sm:$0xf]
    %v355 = vld [vmem:[%s2 + $0xc0] sm:$0xf]
    %v356 = vld [vmem:[%s2 + $0xc4] sm:$0xf]
    %v357 = vld [vmem:[%s2 + $0xc8] sm:$0xf]
    %v358 = vld [vmem:[%s2 + $0xcc] sm:$0xf]
    %v359 = vld [vmem:[%s2 + $0xd0] sm:$0xf]
    %v360 = vld [vmem:[%s2 + $0xd4] sm:$0xf]
    %v361 = vld [vmem:[%s2 + $0xd8] sm:$0xf]
    %v362 = vld [vmem:[%s2 + $0xdc] sm:$0xf]
    %v363 = vld [vmem:[%s2 + $0xe0] sm:$0xf]
    %v364 = vld [vmem:[%s2 + $0xe4] sm:$0xf]
    %v365 = vld [vmem:[%s2 + $0xe8] sm:$0xf]
    %v366 = vld [vmem:[%s2 + $0xec] sm:$0xf]
    %v367 = vld [vmem:[%s2 + $0xf0] sm:$0xf]
    %v368 = vld [vmem:[%s2 + $0xf4] sm:$0xf]
    %v369 = vld [vmem:[%s2 + $0xf8] sm:$0xf]
    %v370 = vld [vmem:[%s2 + $0xfc] sm:$0xf]
    %v435 = vunpack.c.l.b16 %v307
    %v436 = vunpack.c.l.b16 %v308
    %v437 = vunpack.c.l.b16 %v309
    %v438 = vunpack.c.l.b16 %v310
    %v439 = vunpack.c.l.b16 %v311
    %v440 = vunpack.c.l.b16 %v312
    %v441 = vunpack.c.l.b16 %v313
    %v442 = vunpack.c.l.b16 %v314
    %v443 = vunpack.c.l.b16 %v315
    %v444 = vunpack.c.l.b16 %v316
    %v445 = vunpack.c.l.b16 %v317
    %v446 = vunpack.c.l.b16 %v318
    %v447 = vunpack.c.l.b16 %v319
    %v448 = vunpack.c.l.b16 %v320
    %v449 = vunpack.c.l.b16 %v321
    %v450 = vunpack.c.l.b16 %v322
    %v451 = vunpack.c.l.b16 %v323
    %v452 = vunpack.c.l.b16 %v324
    %v453 = vunpack.c.l.b16 %v325
    %v454 = vunpack.c.l.b16 %v326
    %v455 = vunpack.c.l.b16 %v327
    %v456 = vunpack.c.l.b16 %v328
    %v457 = vunpack.c.l.b16 %v329
    %v458 = vunpack.c.l.b16 %v330
    %v459 = vunpack.c.l.b16 %v331
    %v460 = vunpack.c.l.b16 %v332
    %v461 = vunpack.c.l.b16 %v333
    %v462 = vunpack.c.l.b16 %v334
    %v463 = vunpack.c.l.b16 %v335
    %v464 = vunpack.c.l.b16 %v336
    %v465 = vunpack.c.l.b16 %v337
    %v466 = vunpack.c.l.b16 %v338
    %v467 = vunpack.c.l.b16 %v339
    %v468 = vunpack.c.l.b16 %v340
    %v469 = vunpack.c.l.b16 %v341
    %v470 = vunpack.c.l.b16 %v342
    %v471 = vunpack.c.l.b16 %v343
    %v472 = vunpack.c.l.b16 %v344
    %v473 = vunpack.c.l.b16 %v345
    %v474 = vunpack.c.l.b16 %v346
    %v475 = vunpack.c.l.b16 %v347
    %v476 = vunpack.c.l.b16 %v348
    %v477 = vunpack.c.l.b16 %v349
    %v478 = vunpack.c.l.b16 %v350
    %v479 = vunpack.c.l.b16 %v351
    %v480 = vunpack.c.l.b16 %v352
    %v481 = vunpack.c.l.b16 %v353
    %v482 = vunpack.c.l.b16 %v354
    %v483 = vunpack.c.l.b16 %v355
    %v484 = vunpack.c.l.b16 %v356
    %v485 = vunpack.c.l.b16 %v357
    %v486 = vunpack.c.l.b16 %v358
    %v487 = vunpack.c.l.b16 %v359
    %v488 = vunpack.c.l.b16 %v360
    %v489 = vunpack.c.l.b16 %v361
    %v490 = vunpack.c.l.b16 %v362
    %v491 = vunpack.c.l.b16 %v363
    %v492 = vunpack.c.l.b16 %v364
    %v493 = vunpack.c.l.b16 %v365
    %v494 = vunpack.c.l.b16 %v366
    %v495 = vunpack.c.l.b16 %v367
    %v496 = vunpack.c.l.b16 %v368
    %v497 = vunpack.c.l.b16 %v369
    %v498 = vunpack.c.l.b16 %v370
    %v499 = vpack.c.b16 %v436, %v435
    %v500 = vpack.c.b16 %v438, %v437
    %v501 = vpack.c.b16 %v440, %v439
    %v502 = vpack.c.b16 %v442, %v441
    %v503 = vpack.c.b16 %v444, %v443
    %v504 = vpack.c.b16 %v446, %v445
    %v505 = vpack.c.b16 %v448, %v447
    %v506 = vpack.c.b16 %v450, %v449
    %v507 = vpack.c.b16 %v452, %v451
    %v508 = vpack.c.b16 %v454, %v453
    %v509 = vpack.c.b16 %v456, %v455
    %v510 = vpack.c.b16 %v458, %v457
    %v511 = vpack.c.b16 %v460, %v459
    %v512 = vpack.c.b16 %v462, %v461
    %v513 = vpack.c.b16 %v464, %v463
    %v514 = vpack.c.b16 %v466, %v465
    %v515 = vpack.c.b16 %v468, %v467
    %v516 = vpack.c.b16 %v470, %v469
    %v517 = vpack.c.b16 %v472, %v471
    %v518 = vpack.c.b16 %v474, %v473
    %v519 = vpack.c.b16 %v476, %v475
    %v520 = vpack.c.b16 %v478, %v477
    %v521 = vpack.c.b16 %v480, %v479
    %v522 = vpack.c.b16 %v482, %v481
    %v523 = vpack.c.b16 %v484, %v483
    %v524 = vpack.c.b16 %v486, %v485
    %v525 = vpack.c.b16 %v488, %v487
    %v526 = vpack.c.b16 %v490, %v489
    %v527 = vpack.c.b16 %v492, %v491
    %v528 = vpack.c.b16 %v494, %v493
    %v529 = vpack.c.b16 %v496, %v495
    %v530 = vpack.c.b16 %v498, %v497
    %563 = vmatprep.subr.bf16.mxu0 0
    %564 = vmatpush1.bf16.msra.mxu0 %v499
    %565 = vmatprep.subr.bf16.mxu0 0
    %566 = vmatpush1.bf16.msra.mxu0 %v500
    %567 = vmatprep.subr.bf16.mxu0 0
    %568 = vmatpush1.bf16.msra.mxu0 %v501
    %569 = vmatprep.subr.bf16.mxu0 0
    %570 = vmatpush1.bf16.msra.mxu0 %v502
    %571 = vmatprep.subr.bf16.mxu0 0
    %572 = vmatpush1.bf16.msra.mxu0 %v503
    %573 = vmatprep.subr.bf16.mxu0 0
    %574 = vmatpush1.bf16.msra.mxu0 %v504
    %575 = vmatprep.subr.bf16.mxu0 0
    %576 = vmatpush1.bf16.msra.mxu0 %v505
    %577 = vmatprep.subr.bf16.mxu0 0
    %578 = vmatpush1.bf16.msra.mxu0 %v506
    %579 = vmatprep.subr.bf16.mxu0 0
    %580 = vmatpush1.bf16.msra.mxu0 %v507
    %581 = vmatprep.subr.bf16.mxu0 0
    %582 = vmatpush1.bf16.msra.mxu0 %v508
    %583 = vmatprep.subr.bf16.mxu0 0
    %584 = vmatpush1.bf16.msra.mxu0 %v509
    %585 = vmatprep.subr.bf16.mxu0 0
    %586 = vmatpush1.bf16.msra.mxu0 %v510
    %587 = vmatprep.subr.bf16.mxu0 0
    %588 = vmatpush1.bf16.msra.mxu0 %v511
    %589 = vmatprep.subr.bf16.mxu0 0
    %590 = vmatpush1.bf16.msra.mxu0 %v512
    %591 = vmatprep.subr.bf16.mxu0 0
    %592 = vmatpush1.bf16.msra.mxu0 %v513
    %593 = vmatprep.subr.bf16.mxu0 0
    %594 = vmatpush1.bf16.msra.mxu0 %v514
    %595 = vmatprep.mubr.bf16.mxu0 %v304
    %596 = vmatmul.mubr.bf16.gmra.mrb[0].mxu0 %v303
    %v597 = vpop.f32.mrb[0].mxu0
    %v598 = vadd.f32 0.0, %v597
    %v599 = vpop.f32.mrb[0].mxu0
    %v600 = vpop.f32.mrb[0].mxu0
    %v601 = vpop.f32.mrb[0].mxu0
    %602 = vdwg.mxu0
    %603 = vmatprep.subr.bf16.mxu0 0
    %604 = vmatpush1.bf16.msra.mxu0 %v515
    %605 = vmatprep.subr.bf16.mxu0 0
    %606 = vmatpush1.bf16.msra.mxu0 %v516
    %607 = vmatprep.subr.bf16.mxu0 0
    %608 = vmatpush1.bf16.msra.mxu0 %v517
    %609 = vmatprep.subr.bf16.mxu0 0
    %610 = vmatpush1.bf16.msra.mxu0 %v518
    %611 = vmatprep.subr.bf16.mxu0 0
    %612 = vmatpush1.bf16.msra.mxu0 %v519
    %613 = vmatprep.subr.bf16.mxu0 0
    %614 = vmatpush1.bf16.msra.mxu0 %v520
    %615 = vmatprep.subr.bf16.mxu0 0
    %616 = vmatpush1.bf16.msra.mxu0 %v521
    %617 = vmatprep.subr.bf16.mxu0 0
    %618 = vmatpush1.bf16.msra.mxu0 %v522
    %619 = vmatprep.subr.bf16.mxu0 0
    %620 = vmatpush1.bf16.msra.mxu0 %v523
    %621 = vmatprep.subr.bf16.mxu0 0
    %622 = vmatpush1.bf16.msra.mxu0 %v524
    %623 = vmatprep.subr.bf16.mxu0 0
    %624 = vmatpush1.bf16.msra.mxu0 %v525
    %625 = vmatprep.subr.bf16.mxu0 0
    %626 = vmatpush1.bf16.msra.mxu0 %v526
    %627 = vmatprep.subr.bf16.mxu0 0
    %628 = vmatpush1.bf16.msra.mxu0 %v527
    %629 = vmatprep.subr.bf16.mxu0 0
    %630 = vmatpush1.bf16.msra.mxu0 %v528
    %631 = vmatprep.subr.bf16.mxu0 0
    %632 = vmatpush1.bf16.msra.mxu0 %v529
    %633 = vmatprep.subr.bf16.mxu0 0
    %634 = vmatpush1.bf16.msra.mxu0 %v530
    %635 = vmatprep.mubr.bf16.mxu0 %v306
    %636 = vmatmul.mubr.bf16.gmra.mrb[0].mxu0 %v305
    %v637 = vpop.f32.mrb[0].mxu0
    %v638 = vadd.f32 %v598, %v637
    %v639 = vpop.f32.mrb[0].mxu0
    %v640 = vpop.f32.mrb[0].mxu0
    %v641 = vpop.f32.mrb[0].mxu0
    %642 = vdwg.mxu0
    %v643 = vmax.f32 %v638, 0.0
    %v644 = vpack.c.bf16 %v643, %v643
    %v645 = vld [vmem:[%s3] sm:$0xf]
    %v646 = vld [vmem:[%s3 + $0x4] sm:$0xf]
    %v647 = vld [vmem:[%s3 + $0x8] sm:$0xf]
    %v648 = vld [vmem:[%s3 + $0xc] sm:$0xf]
    %v653 = vunpack.c.l.b16 %v645
    %v654 = vunpack.c.l.b16 %v646
    %v655 = vunpack.c.l.b16 %v647
    %v656 = vunpack.c.l.b16 %v648
    %v657 = vpack.c.b16 %v654, %v653
    %v658 = vpack.c.b16 %v656, %v655
    %vm661 = vcmask 261120
    %v663 = vsel %vm661, %v644, 0
    %665 = vmatprep.subr.bf16.mxu0 0
    %666 = vmatpush1.bf16.msra.mxu0 %v657
    %667 = vmatprep.subr.bf16.mxu0 0
    %668 = vmatpush1.bf16.msra.mxu0 %v658
    %669 = vmatprep.subr.bf16.mxu0 0
    %670 = vmatpush1.bf16.msra.mxu0 0
    %671 = vmatprep.subr.bf16.mxu0 0
    %672 = vmatpush1.bf16.msra.mxu0 0
    %673 = vmatprep.subr.bf16.mxu0 0
    %674 = vmatpush1.bf16.msra.mxu0 0
    %675 = vmatprep.subr.bf16.mxu0 0
    %676 = vmatpush1.bf16.msra.mxu0 0
    %677 = vmatprep.subr.bf16.mxu0 0
    %678 = vmatpush1.bf16.msra.mxu0 0
    %679 = vmatprep.subr.bf16.mxu0 0
    %680 = vmatpush1.bf16.msra.mxu0 0
    %681 = vmatprep.subr.bf16.mxu0 0
    %682 = vmatpush1.bf16.msra.mxu0 0
    %683 = vmatprep.subr.bf16.mxu0 0
    %684 = vmatpush1.bf16.msra.mxu0 0
    %685 = vmatprep.subr.bf16.mxu0 0
    %686 = vmatpush1.bf16.msra.mxu0 0
    %687 = vmatprep.subr.bf16.mxu0 0
    %688 = vmatpush1.bf16.msra.mxu0 0
    %689 = vmatprep.subr.bf16.mxu0 0
    %690 = vmatpush1.bf16.msra.mxu0 0
    %691 = vmatprep.subr.bf16.mxu0 0
    %692 = vmatpush1.bf16.msra.mxu0 0
    %693 = vmatprep.subr.bf16.mxu0 0
    %694 = vmatpush1.bf16.msra.mxu0 0
    %695 = vmatprep.subr.bf16.mxu0 0
    %696 = vmatpush1.bf16.msra.mxu0 0
    %697 = vmatprep.mubr.bf16.mxu0 0
    %698 = vmatmul.mubr.bf16.gmra.mrb[0].mxu0 %v663
    %v699 = vpop.f32.mrb[0].mxu0
    %v700 = vadd.f32 0.0, %v699
    %v701 = vpop.f32.mrb[0].mxu0
    %v702 = vpop.f32.mrb[0].mxu0
    %v703 = vpop.f32.mrb[0].mxu0
    %704 = vdwg.mxu0
    %v705 = vmul.f32 %v700, 10.0
    %v706 = vxor.u32 %v705, 2147483648
    %v707 = vmul.f32 %v706, 1.442695
    %v708 = vpow.pop %v707
    %v709 = vadd.f32 %v708, 1.0
    %v710 = vrcp.pop %v709
    %v711 = vmul.f32 1.0, %v710
    %vm712 = vcmask 64512
    %713 = vst.msk [vmem:[#allocation2] sm:$0xff] %vm712, %v711
    // Predicated region
    $region18: #{tpu_custom_call.1} parent=1 // pred_check
      _
    $region19: #{tpu_custom_call.1} parent=1 // pred_check_branch
      %715 = sbr.rel (0) target = $region21
    $region20: #{tpu_custom_call.1} parent=1 // pred_region
      %s717 = ssub.s32 128, 128
      %718 = vsyncadd [#allocation3], %s717
      %s720 = sshll.u32 [#allocation2], 4
      %s721 = int_to_ptr.vmem [resolvable:$true] %s720
      %723 = dma.vmem_to_hbm [thread:$0]  %s721, 128, %s4, [#allocation3]
    $region21: #{tpu_custom_call.1} parent=1 // pred_fallthru
      _
    // Predicated region
    $region22: #{tpu_custom_call.1} parent=1 // pred_check
      _
    $region23: #{tpu_custom_call.1} parent=1 // pred_check_branch
      %725 = sbr.rel (0) target = $region25
    $region24: #{tpu_custom_call.1} parent=1 // pred_region
      %726 = dma.done [#allocation3], 128
    $region25: #{tpu_custom_call.1} parent=1 // pred_fallthru
      _
    %727 = vsyncpa [#allocation3], 1

</llo_original>
